<compile_context>
chip_gen: v7x
topology: tpu7x:2x2x1
jax: 0.10.0
libtpu: 0.0.40
codegen_flags: <defaults>
</compile_context>

<pallas_src>
import functools

import jax
import jax.numpy as jnp
from jax.experimental import pallas as pl
from jax.experimental.pallas import tpu as pltpu


def _gdn_kernel(x_ref, gamma_ref, beta_ref, o_ref, *, inverse):
    # x_ref:     (C, tn)  input slab (channels on sublanes, spatial on lanes)
    # gamma_ref: (C, C)   reparameterized, f32, resident across the grid
    # beta_ref:  (C, 1)   reparameterized, f32, resident across the grid
    xf = x_ref[...].astype(jnp.float32)
    x2 = xf * xf
    # norm[i, s] = sum_j gamma[i, j] * x[j, s]^2 + beta[i]
    norm = jnp.dot(gamma_ref[...], x2, preferred_element_type=jnp.float32)
    norm = norm + beta_ref[...]                    # lane-broadcast (C,1) -> (C,tn)
    if inverse:
        y = xf * jnp.sqrt(norm)
    else:
        y = xf * jax.lax.rsqrt(norm)
    o_ref[...] = y.astype(o_ref.dtype)


def _round_up(a, b):
    return ((a + b - 1) // b) * b


def _pick_spatial_tile(C, HW):
    """Largest lane-dense spatial tile that keeps double-buffered slabs in VMEM."""
    tn = min(4096, _round_up(HW, 128))
    # 2x double-buffered input + 2x output slabs of (C, tn) f32, plus slack for
    # the resident gamma (C, C) and intermediates; stay well under the scoped limit.
    def vmem_bytes(t):
        return 4 * C * t * 4 + C * C * 4 + C * t * 4
    while tn > 128 and vmem_bytes(tn) > 24 * 1024 * 1024:
        tn //= 2
    return max(tn, 128)


def gdn_forward(x, beta_param, gamma_param, *,
                inverse=False, beta_min=1e-6, reparam_offset=2.0 ** (-18)):
    orig_shape = x.shape
    if x.ndim == 5:                                # matches the PyTorch "unfold" path
        n5, c5, d5, w5, h5 = x.shape
        x = x.reshape(n5, c5, d5 * w5, h5)
    N, C, H, W = x.shape
    HW = H * W

    pedestal = reparam_offset ** 2
    beta_bound = (beta_min + pedestal) ** 0.5
    gamma_bound = reparam_offset

    # Hoisted reparameterization (grid-invariant, tiny).
    beta = (jnp.maximum(beta_param.astype(jnp.float32), beta_bound) ** 2
            - pedestal).reshape(C, 1)
    gamma = (jnp.maximum(gamma_param.astype(jnp.float32), gamma_bound) ** 2
             - pedestal)                           # (C, C)

    # Native NCHW layout: (N, C, H*W) is a free reshape, spatial on the lane axis.
    x3d = x.reshape(N, C, HW)

    tn = _pick_spatial_tile(C, HW)
    hw_pad = _round_up(HW, tn)
    if hw_pad != HW:
        # Padded columns are zero -> norm = beta > 0 -> output 0; sliced off below.
        x3d = jnp.pad(x3d, ((0, 0), (0, 0), (0, hw_pad - HW)))

    grid = (N, hw_pad // tn)
    kernel = functools.partial(_gdn_kernel, inverse=inverse)

    out3d = pl.pallas_call(
        kernel,
        out_shape=jax.ShapeDtypeStruct((N, C, hw_pad), x.dtype),
        grid_spec=pltpu.PrefetchScalarGridSpec(
            num_scalar_prefetch=0,
            grid=grid,
            in_specs=[
                # Batch dim squeezed out -> kernel sees a (C, tn) slab.
                pl.BlockSpec((None, C, tn), lambda n, j: (n, 0, j)),
                pl.BlockSpec((C, C), lambda n, j: (0, 0)),   # gamma (resident)
                pl.BlockSpec((C, 1), lambda n, j: (0, 0)),   # beta  (resident)
            ],
            out_specs=pl.BlockSpec((None, C, tn), lambda n, j: (n, 0, j)),
        ),
        compiler_params=pltpu.CompilerParams(
            dimension_semantics=("parallel", "parallel"),
            vmem_limit_bytes=64 * 1024 * 1024,
        ),
    )(x3d, gamma, beta)

    out = out3d[:, :, :HW].reshape(N, C, H, W)
    if len(orig_shape) == 5:
        out = out.reshape(orig_shape)
    return out


def init_gdn_params(ch, *, gamma_init=0.1, reparam_offset=2.0 ** (-18)):
    """Deterministic init matching GDN.build()."""
    pedestal = reparam_offset ** 2
    beta = jnp.sqrt(jnp.ones((ch,), jnp.float32) + pedestal)
    g = gamma_init * jnp.eye(ch, dtype=jnp.float32) + pedestal
    gamma = jnp.sqrt(g)
    return beta, gamma


def _gdn_reference(x, beta_param, gamma_param, *,
                   inverse=False, beta_min=1e-6, reparam_offset=2.0 ** (-18)):
    pedestal = reparam_offset ** 2
    beta_bound = (beta_min + pedestal) ** 0.5
    gamma_bound = reparam_offset
    beta = jnp.maximum(beta_param, beta_bound) ** 2 - pedestal
    gamma = jnp.maximum(gamma_param, gamma_bound) ** 2 - pedestal
    # conv2d with 1x1 kernel == einsum over channels.
    norm = jnp.einsum('ij,bjhw->bihw', gamma, x * x) + beta[None, :, None, None]
    norm = jnp.sqrt(norm)
    return x * norm if inverse else x / norm


if __name__ == "__main__":
    key = jax.random.PRNGKey(0)
    N, C, H, W = 2, 4, 16, 16
    x = jax.random.normal(key, (N, C, H, W), dtype=jnp.float32)

    beta_param, gamma_param = init_gdn_params(C)

    out = gdn_forward(x, beta_param, gamma_param, inverse=False)
    out = jax.block_until_ready(out)

    ref = _gdn_reference(x, beta_param, gamma_param, inverse=False)
    assert out.shape == (N, C, H, W)
    assert jnp.allclose(out, ref, atol=1e-5, rtol=1e-5), "mismatch vs reference"

    print("KERNEL_OK")
</pallas_src>

<mosaic_0001>
module attributes {stable_mosaic.version = 11 : i64} {
  func.func @_gdn_kernel(%arg0: i32, %arg1: i32, %arg2: memref<1x4x256xf32, #tpu.memory_space<vmem>>, %arg3: memref<4x4xf32, #tpu.memory_space<vmem>>, %arg4: memref<4x1xf32, #tpu.memory_space<vmem>>, %arg5: memref<1x4x256xf32, #tpu.memory_space<vmem>>) attributes {dimension_semantics = [#tpu.dimension_semantics<parallel>, #tpu.dimension_semantics<parallel>], iteration_bounds = array<i64: 2, 1>, scalar_prefetch = 0 : i64, scratch_operands = 0 : i64, tpu.core_type = #tpu.core_type<tc>, window_params = [{transform_indices = @transform_0, window_bounds = array<i64: 1, 4, 256>}, {pipeline_mode = #tpu.pipeline_mode<synchronous>, transform_indices = @transform_1, window_bounds = array<i64: 4, 4>}, {pipeline_mode = #tpu.pipeline_mode<synchronous>, transform_indices = @transform_2, window_bounds = array<i64: 4, 1>}, {transform_indices = @transform_3, window_bounds = array<i64: 1, 4, 256>}]} {
    %c0 = arith.constant 0 : index
    %c0_0 = arith.constant 0 : index
    %c0_1 = arith.constant 0 : index
    %0 = vector.load %arg2[%c0, %c0_0, %c0_1] : memref<1x4x256xf32, #tpu.memory_space<vmem>>, vector<1x4x256xf32>
    %1 = vector.shape_cast %0 : vector<1x4x256xf32> to vector<4x256xf32>
    %2 = arith.mulf %1, %1 : vector<4x256xf32>
    %c0_2 = arith.constant 0 : index
    %c0_3 = arith.constant 0 : index
    %3 = vector.load %arg3[%c0_2, %c0_3] : memref<4x4xf32, #tpu.memory_space<vmem>>, vector<4x4xf32>
    %cst = arith.constant dense<0.000000e+00> : vector<4x256xf32>
    %4 = tpu.matmul %3, %2, %cst {dimension_numbers = #tpu.dot_dimension_numbers<[1], [0], [0], [1], [0, 0, 1, 1], [], []>} : vector<4x4xf32>, vector<4x256xf32>, vector<4x256xf32> -> vector<4x256xf32>
    %c0_4 = arith.constant 0 : index
    %c0_5 = arith.constant 0 : index
    %5 = vector.load %arg4[%c0_4, %c0_5] : memref<4x1xf32, #tpu.memory_space<vmem>>, vector<4x1xf32>
    %6 = vector.broadcast %5 : vector<4x1xf32> to vector<4x256xf32>
    %7 = arith.addf %4, %6 : vector<4x256xf32>
    %8 = math.rsqrt %7 : vector<4x256xf32>
    %9 = arith.mulf %1, %8 : vector<4x256xf32>
    %c0_6 = arith.constant 0 : index
    %c0_7 = arith.constant 0 : index
    %c0_8 = arith.constant 0 : index
    %10 = vector.load %arg5[%c0_6, %c0_7, %c0_8] : memref<1x4x256xf32, #tpu.memory_space<vmem>>, vector<1x4x256xf32>
    %11 = vector.shape_cast %10 : vector<1x4x256xf32> to vector<4x256xf32>
    %12 = vector.shape_cast %9 : vector<4x256xf32> to vector<1x4x256xf32>
    tpu.vector_store %arg5[%c0_6, %c0_7, %c0_8], %12 {strides = array<i32>} : memref<1x4x256xf32, #tpu.memory_space<vmem>>, vector<1x4x256xf32>,
    return
  }
  func.func @transform_0(%arg0: i32, %arg1: i32) -> (i32, i32, i32) {
    %c0_i32 = arith.constant 0 : i32
    %c0_i32_0 = arith.constant 0 : i32
    return %arg0, %c0_i32, %arg1 : i32, i32, i32
  }
  func.func @transform_1(%arg0: i32, %arg1: i32) -> (i32, i32) {
    %c0_i32 = arith.constant 0 : i32
    %c0_i32_0 = arith.constant 0 : i32
    %c0_i32_1 = arith.constant 0 : i32
    return %c0_i32, %c0_i32_0 : i32, i32
  }
  func.func @transform_2(%arg0: i32, %arg1: i32) -> (i32, i32) {
    %c0_i32 = arith.constant 0 : i32
    %c0_i32_0 = arith.constant 0 : i32
    %c0_i32_1 = arith.constant 0 : i32
    return %c0_i32, %c0_i32_0 : i32, i32
  }
  func.func @transform_3(%arg0: i32, %arg1: i32) -> (i32, i32, i32) {
    %c0_i32 = arith.constant 0 : i32
    %c0_i32_0 = arith.constant 0 : i32
    return %arg0, %c0_i32, %arg1 : i32, i32, i32
  }
}

</mosaic_0001>

<llo_original>
// kernel: tpu_custom_call.1
$region0: #{tpu_custom_call.1}
  #allocation0 [shape = 'u32[]', space=smem, size = 0x4, offset = 0x4, fixed_abs, tag = 'smem constant byte address 0x4 - core index']
  #allocation1 [shape = 'u32[144,128]{1,0:T(1,128)}', space=vmem, size = 0x12000, scoped, tag = 'internal scratch']
  %s0 = inlined_call_operand.hbm [shape: f32[2,4,256], index: 0, kind: input, shape index: {}]
  %s1 = inlined_call_operand.hbm [shape: f32[4,4], index: 1, kind: input, shape index: {}]
  %s2 = inlined_call_operand.hbm [shape: f32[4,1], index: 2, kind: input, shape index: {}]
  %s3 = inlined_call_operand.hbm [shape: f32[2,4,256], index: 3, kind: output, shape index: {}]
  %s4 = sld [smem:[#allocation0]]
  $region57: #{tpu_custom_call.1} parent=0
    _
  %s6 = ssub.s32 1, %s4
  %s7 = scalar_select 0, %s6, %s4
  $region1: #{tpu_custom_call.1} parent=0
    #allocation2 [shape = 'u8[8192]{0}', space=vmem, size = 0x2000, scoped, tag = 'input window, operand 0']
    #allocation3 [shape = 's32[2]{0}', space=sflag, size = 0x8, scoped, tag = 'scoped memory for tpu_custom_call.1']
    #allocation4 [shape = 's32[2]{0}', space=sflag, size = 0x8, scoped, tag = 'scoped memory for tpu_custom_call.1']
    #allocation5 [shape = 'u8[2048]{0}', space=vmem, size = 0x800, scoped, tag = 'input window, operand 1, single buffered']
    #allocation6 [shape = 's32[1]{0}', space=sflag, size = 0x4, scoped, tag = 'scoped memory for tpu_custom_call.1']
    #allocation7 [shape = 'u8[2048]{0}', space=vmem, size = 0x800, scoped, tag = 'input window, operand 2, single buffered']
    #allocation8 [shape = 'u8[8192]{0}', space=vmem, size = 0x2000, scoped, tag = 'output window, operand 0']
    %8 = vsyncpa [#allocation3], 0
    %s9 = scalar_lea.sflag [#allocation3], 1
    %10 = vsyncpa %s9, 0
    %11 = vsyncpa [#allocation6], 0
    %12 = vsyncpa [#allocation4], 0
    %s13 = scalar_lea.sflag [#allocation4], 1
    %14 = vsyncpa %s13, 0
    loop: start=0, step=1, limit=4
    $region2: #{tpu_custom_call.1} parent=1 // loop_pre_header
      _
    $region3: #{tpu_custom_call.1} parent=1 // loop_header
      %s16 = sphi 0, %s20
      %p17 = scmp.ge.s32.totalorder %s16, 4
      %s23 = sphi 0, %s35
      %s24 = sphi 0, %s31
      %s25 = sphi 0, %s23
      %s26 = sphi 0, %s24
      %s27 = sphi 0, %s25
      %s28 = sphi 0, %s26
      %s40 = sphi 0, %s42
      %s43 = sphi 0, %s40
      %s44 = sphi 0, %s43
      %s60 = sphi 0, %s44
      %s64 = sphi 0, %s64
      %s66 = sphi 0, %s64
      %s67 = sphi 0, %s66
      %s81 = sphi 0, %s67
      %s85 = sphi 0, %s85
      %s87 = sphi 0, %s85
      %s88 = sphi 0, %s87
      %s102 = sphi 0, %s88
      %s110 = sphi 0, %s112
      %s113 = sphi 0, %s110
      %s114 = sphi 0, %s113
      %s130 = sphi 0, %s114
    $region4: #{tpu_custom_call.1} parent=1 // loop_header_branch
      %19 = sbr.rel (%p17) target = $region8
    $region5: #{tpu_custom_call.1} parent=1 // loop_body
      %s21 = ssub.s32 %s16, 1
      %s22 = ssub.s32 %s16, 2
      %s29 = sadd.s32 1, %s24
      %p30 = scmp.ge.s32.totalorder %s29, 1
      %s31 = scalar_select %p30, 0, %s29
      %s32 = sadd.s32 1, %s23
      %s33 = scalar_select %p30, %s32, %s23
      %p34 = scmp.ge.s32.totalorder %s33, 2
      %s35 = scalar_select %p34, 0, %s33
      %s36 = ssub.s32 %s23, %s35
      %s37 = ssub.s32 %s24, %s31
      %s38 = sor.u32 %s36, %s37
      %p39 = scmp.eq.s32.totalorder %s38, 0
      %s41 = sadd.s32 %s40, 1
      %s42 = scalar_select %p39, %s40, %s41
      %p45 = pneg %p39
      %p46 = scmp.eq.s32.totalorder %s16, 1
      %p47 = por %p45, %p46
      %p48 = scmp.ne.s32.totalorder %s40, %s43
      %p49 = scmp.eq.s32.totalorder %s16, 0
      %p50 = por %p48, %p49
      %p51 = scmp.ne.s32.totalorder %s40, %s43
      %p52 = scmp.eq.s32.totalorder %s21, 1
      %p53 = por %p51, %p52
      %p54 = scmp.ne.s32.totalorder %s43, %s44
      %p55 = scmp.eq.s32.totalorder %s21, 0
      %p56 = por %p54, %p55
      %p57 = scmp.ne.s32.totalorder %s43, %s44
      %p58 = scmp.eq.s32.totalorder %s22, 1
      %p59 = por %p57, %p58
      %p61 = scmp.ne.s32.totalorder %s44, %s60
      %p62 = scmp.eq.s32.totalorder %s22, 0
      %p63 = por %p61, %p62
      %s65 = sadd.s32 %s64, 1
      %p68 = scmp.eq.s32.totalorder %s16, 1
      %p69 = scmp.ne.s32.totalorder %s64, %s66
      %p70 = scmp.eq.s32.totalorder %s16, 0
      %p71 = por %p69, %p70
      %p72 = scmp.ne.s32.totalorder %s64, %s66
      %p73 = scmp.eq.s32.totalorder %s21, 1
      %p74 = por %p72, %p73
      %p75 = scmp.ne.s32.totalorder %s66, %s67
      %p76 = scmp.eq.s32.totalorder %s21, 0
      %p77 = por %p75, %p76
      %p78 = scmp.ne.s32.totalorder %s66, %s67
      %p79 = scmp.eq.s32.totalorder %s22, 1
      %p80 = por %p78, %p79
      %p82 = scmp.ne.s32.totalorder %s67, %s81
      %p83 = scmp.eq.s32.totalorder %s22, 0
      %p84 = por %p82, %p83
      %s86 = sadd.s32 %s85, 1
      %p89 = scmp.eq.s32.totalorder %s16, 1
      %p90 = scmp.ne.s32.totalorder %s85, %s87
      %p91 = scmp.eq.s32.totalorder %s16, 0
      %p92 = por %p90, %p91
      %p93 = scmp.ne.s32.totalorder %s85, %s87
      %p94 = scmp.eq.s32.totalorder %s21, 1
      %p95 = por %p93, %p94
      %p96 = scmp.ne.s32.totalorder %s87, %s88
      %p97 = scmp.eq.s32.totalorder %s21, 0
      %p98 = por %p96, %p97
      %p99 = scmp.ne.s32.totalorder %s87, %s88
      %p100 = scmp.eq.s32.totalorder %s22, 1
      %p101 = por %p99, %p100
      %p103 = scmp.ne.s32.totalorder %s88, %s102
      %p104 = scmp.eq.s32.totalorder %s22, 0
      %p105 = por %p103, %p104
      %s106 = ssub.s32 %s23, %s35
      %s107 = ssub.s32 %s24, %s31
      %s108 = sor.u32 %s106, %s107
      %p109 = scmp.eq.s32.totalorder %s108, 0
      %s111 = sadd.s32 %s110, 1
      %s112 = scalar_select %p109, %s110, %s111
      %p115 = pneg %p109
      %p116 = scmp.eq.s32.totalorder %s16, 1
      %p117 = por %p115, %p116
      %p118 = scmp.ne.s32.totalorder %s110, %s113
      %p119 = scmp.eq.s32.totalorder %s16, 0
      %p120 = por %p118, %p119
      %p121 = scmp.ne.s32.totalorder %s110, %s113
      %p122 = scmp.eq.s32.totalorder %s21, 1
      %p123 = por %p121, %p122
      %p124 = scmp.ne.s32.totalorder %s113, %s114
      %p125 = scmp.eq.s32.totalorder %s21, 0
      %p126 = por %p124, %p125
      %p127 = scmp.ne.s32.totalorder %s113, %s114
      %p128 = scmp.eq.s32.totalorder %s22, 1
      %p129 = por %p127, %p128
      %p131 = scmp.ne.s32.totalorder %s114, %s130
      %p132 = scmp.eq.s32.totalorder %s22, 0
      %p133 = por %p131, %p132
      %p134 = scmp.le.s32.totalorder 1, %s16
      %p135 = scmp.lt.s32.totalorder %s16, 3
      %p136 = pnand %p134, %p135
      %p137 = pneg %p136
      // Predicated region
      $region9: #{tpu_custom_call.1} parent=5 // pred_check
        _
      $region10: #{tpu_custom_call.1} parent=5 // pred_check_branch
        %139 = sbr.rel (%p136) target = $region12
      $region11: #{tpu_custom_call.1} parent=5 // pred_region
        %s140 = ssub.s32 %s16, 1
        // Predicated region
        $region13: #{tpu_custom_call.1} parent=11 // pred_check
          %p141 = pneg %p77
        $region14: #{tpu_custom_call.1} parent=11 // pred_check_branch
          %143 = sbr.rel (%p141) target = $region16
        $region15: #{tpu_custom_call.1} parent=11 // pred_region
          %s145 = ssub.s32 64, 64
          %146 = vsyncadd [#allocation6], %s145
          %s148 = sshll.u32 [#allocation5], 4
          %s149 = int_to_ptr.vmem [resolvable:$true] %s148
          %151 = dma.hbm_to_vmem [thread:$0]  %s1, 64, %s149, [#allocation6]
        $region16: #{tpu_custom_call.1} parent=11 // pred_fallthru
          _
        // Predicated region
        $region17: #{tpu_custom_call.1} parent=11 // pred_check
          %p152 = pneg %p98
        $region18: #{tpu_custom_call.1} parent=11 // pred_check_branch
          %154 = sbr.rel (%p152) target = $region20
        $region19: #{tpu_custom_call.1} parent=11 // pred_region
          %s156 = ssub.s32 64, 64
          %157 = vsyncadd [#allocation6], %s156
          %s159 = sshll.u32 [#allocation7], 4
          %s160 = int_to_ptr.vmem [resolvable:$true] %s159
          %162 = dma.hbm_to_vmem [thread:$0]  %s2, 64, %s160, [#allocation6]
        $region20: #{tpu_custom_call.1} parent=11 // pred_fallthru
          _
      $region12: #{tpu_custom_call.1} parent=5 // pred_fallthru
        _
      %p163 = scmp.lt.s32.totalorder %s16, 2
      // Predicated region
      $region21: #{tpu_custom_call.1} parent=5 // pred_check
        %p164 = pneg %p163
      $region22: #{tpu_custom_call.1} parent=5 // pred_check_branch
        %166 = sbr.rel (%p164) target = $region24
      $region23: #{tpu_custom_call.1} parent=5 // pred_region
        // Predicated region
        $region25: #{tpu_custom_call.1} parent=23 // pred_check
          %p167 = pneg %p50
        $region26: #{tpu_custom_call.1} parent=23 // pred_check_branch
          %169 = sbr.rel (%p167) target = $region28
        $region27: #{tpu_custom_call.1} parent=23 // pred_region
          %s170 = sand.u32 %s40, 1
          %s171 = scalar_lea.sflag [#allocation3], %s170
          %s172 = sand.u32 %s40, 1
          %s173 = smul.addr %s172, 8
          %s174 = scalar_lea.vmem [#allocation2], %s173
          %s175 = smul.u32 2, %s24
          %s177 = ssub.s32 128, 128
          %178 = vsyncadd %s171, %s177
          %s179 = smul.addr %s23, 2
          %s180 = sadd.s32 %s175, %s179
          %s181 = smul.addr %s180, 64
          %s182 = scalar_lea.hbm %s0, %s181
          %s184 = sshll.u32 %s174, 4
          %s185 = int_to_ptr.vmem [resolvable:$true] %s184
          %187 = dma.hbm_to_vmem [thread:$0]  %s182, 128, %s185, %s171
        $region28: #{tpu_custom_call.1} parent=23 // pred_fallthru
          _
      $region24: #{tpu_custom_call.1} parent=5 // pred_fallthru
        _
      %p188 = scmp.le.s32.totalorder 1, %s16
      %p189 = scmp.lt.s32.totalorder %s16, 3
      %p190 = pnand %p188, %p189
      %p191 = pneg %p190
      // Predicated region
      $region29: #{tpu_custom_call.1} parent=5 // pred_check
        _
      $region30: #{tpu_custom_call.1} parent=5 // pred_check_branch
        %193 = sbr.rel (%p190) target = $region32
      $region31: #{tpu_custom_call.1} parent=5 // pred_region
        %s194 = ssub.s32 %s16, 1
        %s195 = sand.u32 %s43, 1
        %s196 = scalar_lea.sflag [#allocation3], %s195
        %s197 = sand.u32 %s43, 1
        %s198 = smul.addr %s197, 8
        %s199 = scalar_lea.vmem [#allocation2], %s198
        // Predicated region
        $region33: #{tpu_custom_call.1} parent=31 // pred_check
          %p200 = pneg %p56
        $region34: #{tpu_custom_call.1} parent=31 // pred_check_branch
          %202 = sbr.rel (%p200) target = $region36
        $region35: #{tpu_custom_call.1} parent=31 // pred_region
          %203 = dma.done %s196, 128
        $region36: #{tpu_custom_call.1} parent=31 // pred_fallthru
          _
        // Predicated region
        $region37: #{tpu_custom_call.1} parent=31 // pred_check
          %p204 = pneg %p77
        $region38: #{tpu_custom_call.1} parent=31 // pred_check_branch
          %206 = sbr.rel (%p204) target = $region40
        $region39: #{tpu_custom_call.1} parent=31 // pred_region
          %207 = dma.done [#allocation6], 64
        $region40: #{tpu_custom_call.1} parent=31 // pred_fallthru
          _
        // Predicated region
        $region41: #{tpu_custom_call.1} parent=31 // pred_check
          %p208 = pneg %p98
        $region42: #{tpu_custom_call.1} parent=31 // pred_check_branch
          %210 = sbr.rel (%p208) target = $region44
        $region43: #{tpu_custom_call.1} parent=31 // pred_region
          %211 = dma.done [#allocation6], 64
        $region44: #{tpu_custom_call.1} parent=31 // pred_fallthru
          _
        %s212 = sand.u32 %s43, 1
        %s213 = scalar_lea.sflag [#allocation3], %s212
        %s214 = sand.u32 %s43, 1
        %s215 = smul.addr %s214, 8
        %s216 = scalar_lea.vmem [#allocation2], %s215
        %p217 = pneg %p56
        %p218 = pneg %p53
        %p219 = pneg %p77
        %p220 = pneg %p74
        %p221 = pneg %p98
        %p222 = pneg %p95
        %p223 = pneg %p126
        %p224 = pneg %p123
        %s225 = sand.u32 %s113, 1
        %s226 = scalar_lea.sflag [#allocation4], %s225
        %s227 = sand.u32 %s113, 1
        %s228 = smul.addr %s227, 8
        %s229 = scalar_lea.vmem [#allocation8], %s228
        %s230 = smul.u32 2, %s26
        %s231 = smul.u32 2, %s26
        %v232 = vld [vmem:[%s199] sm:$0xff]
        %v233 = vmul.f32 %v232, %v232
        %v234 = vld [vmem:[#allocation5] sm:$0xf]
        %v235 = vld [vmem:[#allocation7] sm:$0xf]
        %237 = vset.pattern.permute.xlu0 0
        %238 = vperm.xlu0 %237, %v235
        %v239 = vpop.permute.xlu0 %238
        %v242 = vcombine.high %v233, %v233
        %vm243 = vcmask 31744
        %v245 = vsel %vm243, %v234, 0
        %vm247 = vcmask 1043456
        %v248 = vsel %vm247, %v233, 0
        %v250 = vsel %vm247, %v242, 0
        %252 = vmatprep.subr.mxu0 %v250
        %253 = vmatpush1.msra.mxu0 %v248
        %254 = vmatprep.subr.mxu0 0.0
        %255 = vmatpush1.msra.mxu0 0.0
        %256 = vmatprep.subr.mxu0 0.0
        %257 = vmatpush1.msra.mxu0 0.0
        %258 = vmatprep.subr.mxu0 0.0
        %259 = vmatpush1.msra.mxu0 0.0
        %260 = vmatprep.subr.mxu0 0.0
        %261 = vmatpush1.msra.mxu0 0.0
        %262 = vmatprep.subr.mxu0 0.0
        %263 = vmatpush1.msra.mxu0 0.0
        %264 = vmatprep.subr.mxu0 0.0
        %265 = vmatpush1.msra.mxu0 0.0
        %266 = vmatprep.subr.mxu0 0.0
        %267 = vmatpush1.msra.mxu0 0.0
        %268 = vmatprep.subr.mxu0 0.0
        %269 = vmatpush1.msra.mxu0 0.0
        %270 = vmatprep.subr.mxu0 0.0
        %271 = vmatpush1.msra.mxu0 0.0
        %272 = vmatprep.subr.mxu0 0.0
        %273 = vmatpush1.msra.mxu0 0.0
        %274 = vmatprep.subr.mxu0 0.0
        %275 = vmatpush1.msra.mxu0 0.0
        %276 = vmatprep.subr.mxu0 0.0
        %277 = vmatpush1.msra.mxu0 0.0
        %278 = vmatprep.subr.mxu0 0.0
        %279 = vmatpush1.msra.mxu0 0.0
        %280 = vmatprep.subr.mxu0 0.0
        %281 = vmatpush1.msra.mxu0 0.0
        %282 = vmatprep.subr.mxu0 0.0
        %283 = vmatpush1.msra.mxu0 0.0
        %284 = vmatprep.subr.mxu0 0.0
        %285 = vmatpush1.msra.mxu0 0.0
        %286 = vmatprep.subr.mxu0 0.0
        %287 = vmatpush1.msra.mxu0 0.0
        %288 = vmatprep.subr.mxu0 0.0
        %289 = vmatpush1.msra.mxu0 0.0
        %290 = vmatprep.subr.mxu0 0.0
        %291 = vmatpush1.msra.mxu0 0.0
        %292 = vmatprep.subr.mxu0 0.0
        %293 = vmatpush1.msra.mxu0 0.0
        %294 = vmatprep.subr.mxu0 0.0
        %295 = vmatpush1.msra.mxu0 0.0
        %296 = vmatprep.subr.mxu0 0.0
        %297 = vmatpush1.msra.mxu0 0.0
        %298 = vmatprep.subr.mxu0 0.0
        %299 = vmatpush1.msra.mxu0 0.0
        %300 = vmatprep.subr.mxu0 0.0
        %301 = vmatpush1.msra.mxu0 0.0
        %302 = vmatprep.subr.mxu0 0.0
        %303 = vmatpush1.msra.mxu0 0.0
        %304 = vmatprep.subr.mxu0 0.0
        %305 = vmatpush1.msra.mxu0 0.0
        %306 = vmatprep.subr.mxu0 0.0
        %307 = vmatpush1.msra.mxu0 0.0
        %308 = vmatprep.subr.mxu0 0.0
        %309 = vmatpush1.msra.mxu0 0.0
        %310 = vmatprep.subr.mxu0 0.0
        %311 = vmatpush1.msra.mxu0 0.0
        %312 = vmatprep.subr.mxu0 0.0
        %313 = vmatpush1.msra.mxu0 0.0
        %314 = vmatprep.subr.mxu0 0.0
        %315 = vmatpush1.msra.mxu0 0.0
        %316 = vmatprep.mubr.f32.mxu0 0.0
        %317 = vmatmul.mubr.f32.gmra.mrb[0].mxu0 %v245
        %v318 = vpop.f32.mrb[0].mxu0
        %v319 = vadd.f32 %v239, %v318
        %v320 = vpop.f32.mrb[0].mxu0
        %v321 = vadd.f32 %v239, %v320
        %322 = vdwg.mxu0
        %v323 = vrsqrt.pop %v319
        %v324 = vrsqrt.pop %v321
        %v327 = vcombine.low %v323, %v324
        %v329 = vmul.f32 %v232, %v327
        %330 = vst [vmem:[%s229] sm:$0xff] %v329
        %s331 = sand.u32 %s113, 1
        %s332 = scalar_lea.sflag [#allocation4], %s331
        %s333 = sand.u32 %s113, 1
        %s334 = smul.addr %s333, 8
        %s335 = scalar_lea.vmem [#allocation8], %s334
        // Predicated region
        $region45: #{tpu_custom_call.1} parent=31 // pred_check
          %p336 = pneg %p123
        $region46: #{tpu_custom_call.1} parent=31 // pred_check_branch
          %338 = sbr.rel (%p336) target = $region48
        $region47: #{tpu_custom_call.1} parent=31 // pred_region
          %s339 = smul.u32 2, %s26
          %s341 = ssub.s32 128, 128
          %342 = vsyncadd %s332, %s341
          %s343 = smul.addr %s25, 2
          %s344 = sadd.s32 %s339, %s343
          %s345 = smul.addr %s344, 64
          %s346 = scalar_lea.hbm %s3, %s345
          %s348 = sshll.u32 %s335, 4
          %s349 = int_to_ptr.vmem [resolvable:$true] %s348
          %351 = dma.vmem_to_hbm [thread:$0]  %s349, 128, %s346, %s332
        $region48: #{tpu_custom_call.1} parent=31 // pred_fallthru
          _
      $region32: #{tpu_custom_call.1} parent=5 // pred_fallthru
        _
      %p352 = scmp.le.s32.totalorder 2, %s16
      // Predicated region
      $region49: #{tpu_custom_call.1} parent=5 // pred_check
        %p353 = pneg %p352
      $region50: #{tpu_custom_call.1} parent=5 // pred_check_branch
        %355 = sbr.rel (%p353) target = $region52
      $region51: #{tpu_custom_call.1} parent=5 // pred_region
        %s356 = ssub.s32 %s16, 2
        // Predicated region
        $region53: #{tpu_custom_call.1} parent=51 // pred_check
          %p357 = pneg %p129
        $region54: #{tpu_custom_call.1} parent=51 // pred_check_branch
          %359 = sbr.rel (%p357) target = $region56
        $region55: #{tpu_custom_call.1} parent=51 // pred_region
          %s360 = sand.u32 %s114, 1
          %s361 = scalar_lea.sflag [#allocation4], %s360
          %s362 = sand.u32 %s114, 1
          %s363 = smul.addr %s362, 8
          %s364 = scalar_lea.vmem [#allocation8], %s363
          %365 = dma.done %s361, 128
        $region56: #{tpu_custom_call.1} parent=51 // pred_fallthru
          _
      $region52: #{tpu_custom_call.1} parent=5 // pred_fallthru
        _
    $region6: #{tpu_custom_call.1} parent=1 // loop_footer
      %s20 = sadd.s32 1, %s16
    $region7: #{tpu_custom_call.1} parent=1 // loop_footer_branch
      %15 = sbr.rel target = $region3
    $region8: #{tpu_custom_call.1} parent=1 // loop_exit
      _
    %366 = vsyncpa [#allocation3], 1
    %s367 = scalar_lea.sflag [#allocation3], 1
    %368 = vsyncpa %s367, 1
    %369 = vsyncpa [#allocation6], 1
    %370 = vsyncpa [#allocation4], 1
    %s371 = scalar_lea.sflag [#allocation4], 1
    %372 = vsyncpa %s371, 1

</llo_original>
